<compile_context>
chip_gen: v5e
topology: v5e:2x2
jax: 0.10.0
libtpu: 0.0.40
codegen_flags: <defaults>
</compile_context>

<pallas_src>
import functools

import jax
import jax.numpy as jnp
import numpy as np
from jax.experimental import pallas as pl
from jax.experimental.pallas import tpu as pltpu


def _round_up(x, m):
    return ((x + m - 1) // m) * m


def _ipm_kernel(pts_ref, coef_ref, img_ref, out_ref, *,
                H_img, W_img, C, N_cams, extrinsic):
    """One grid step = (batch b, point-tile p, camera n).

    pts_ref  : [2, TILE_P]        VMEM  plane points (row0 = x, row1 = y)
    coef_ref : [B*N, 9]           SMEM  projection coefficients per (b, n)
    img_ref  : [1, 1, C*H, W]     VMEM  native-NCHW camera image (bf16)
    out_ref  : [1, C, TILE_P]     VMEM  max-over-cameras accumulator (f32)
    """
    b = pl.program_id(0)
    n = pl.program_id(2)
    bn = b * N_cams + n

    pts = pts_ref[...]                       # [2, TP] f32
    xs = pts[0:1, :]                         # [1, TP]
    ys = pts[1:2, :]                         # [1, TP]
    tp = pts.shape[1]

    # --- projection: 3-term scalar-broadcast FMAs (coefficients from SMEM) ---
    cx0 = coef_ref[bn, 0]
    cx1 = coef_ref[bn, 1]
    cx2 = coef_ref[bn, 2]
    cy0 = coef_ref[bn, 3]
    cy1 = coef_ref[bn, 4]
    cy2 = coef_ref[bn, 5]
    pix_x = cx0 * xs + cx1 * ys + cx2        # [1, TP] image column coordinate
    pix_y = cy0 * xs + cy1 * ys + cy2        # [1, TP] image row coordinate
    if not extrinsic:
        cd0 = coef_ref[bn, 6]
        cd1 = coef_ref[bn, 7]
        cd2 = coef_ref[bn, 8]
        den = cd0 * xs + cd1 * ys + cd2 + 1e-07
        pix_x = pix_x / den
        pix_y = pix_y / den

    # --- separable bilinear weights (exactly mirrors the torch reference) ---
    x_max = float(W_img - 1)
    y_max = float(H_img - 1)
    x0f = jnp.floor(pix_x)
    x1f = x0f + 1.0
    y0f = jnp.floor(pix_y)
    y1f = y0f + 1.0
    x0c = jnp.clip(x0f, 0.0, x_max)
    x1c = jnp.clip(x1f, 0.0, x_max)
    y0c = jnp.clip(y0f, 0.0, y_max)
    y1c = jnp.clip(y1f, 0.0, y_max)
    wx0 = x1c - pix_x
    wx1 = pix_x - x0c
    wy0 = y1c - pix_y
    wy1 = pix_y - y0c
    x0i = x0c.astype(jnp.int32)              # small, exact int coords
    x1i = x1c.astype(jnp.int32)
    y0i = y0c.astype(jnp.int32)
    y1i = y1c.astype(jnp.int32)

    col_iota = jax.lax.broadcasted_iota(jnp.int32, (W_img, tp), 0)
    row_iota = jax.lax.broadcasted_iota(jnp.int32, (H_img, tp), 0)
    # Duplicate (border-clamped) indices sum their weights, matching the
    # gather-based reference.
    wxT = (wx0 * (col_iota == x0i).astype(jnp.float32)
           + wx1 * (col_iota == x1i).astype(jnp.float32))      # [W, TP]
    wyT = (wy0 * (row_iota == y0i).astype(jnp.float32)
           + wy1 * (row_iota == y1i).astype(jnp.float32))      # [H, TP]

    # --- contract the W axis on the MXU (bf16 operands, f32 accumulation) ---
    img = img_ref[0, 0]                                        # [C*H, W] bf16
    t = jnp.dot(img, wxT.astype(img.dtype),
                preferred_element_type=jnp.float32)            # [C*H, TP] f32

    # --- contract the H axis per channel (VPU multiply + sublane reduce) ---
    rows = []
    for c in range(C):
        tc = t[c * H_img:(c + 1) * H_img, :]                   # [H, TP]
        rows.append(jnp.sum(tc * wyT, axis=0, keepdims=True))  # [1, TP]
    sampled = jnp.concatenate(rows, axis=0)                    # [C, TP]

    # --- max over the camera axis (innermost "arbitrary" grid axis) ---
    @pl.when(n == 0)
    def _():
        out_ref[0] = sampled

    @pl.when(n > 0)
    def _():
        out_ref[0] = jnp.maximum(out_ref[0], sampled)


def _make_planes(xbound, ybound):
    """plane_grid() with zs = yaws = rolls = pitchs = 0 (identity rotation).

    Returns pts [2, npoints] (row0 = x over xbound fastest, row1 = y over
    ybound), flattened row-major over (h, w); npoints = h * w."""
    w_out = int((xbound[1] - xbound[0]) / xbound[2])
    h_out = int((ybound[1] - ybound[0]) / ybound[2])
    xs = jnp.linspace(xbound[0], xbound[1], w_out, dtype=jnp.float32)
    ys = jnp.linspace(ybound[0], ybound[1], h_out, dtype=jnp.float32)
    xg = jnp.broadcast_to(xs[None, :], (h_out, w_out)).reshape(-1)
    yg = jnp.broadcast_to(ys[:, None], (h_out, w_out)).reshape(-1)
    pts = jnp.stack([xg, yg], axis=0).astype(jnp.float32)      # [2, npts]
    return pts, h_out, w_out


def _projection_coeffs(Ks, RTs, H, W, extrinsic):
    """Reduce P = K @ RT (z = 0 plane) to 9 scalars per (b, n) for SMEM."""
    B, N = Ks.shape[0], Ks.shape[1]
    P = jnp.einsum("bnij,bnjk->bnik",
                   Ks.astype(jnp.float32),
                   RTs.astype(jnp.float32)).reshape(B * N, 4, 4)
    if extrinsic:
        # perspective(): pix_x = P[2,:]·(x,y,0,1) - W/8 ; pix_y = P[0,:]·(..) + H/2
        cx = jnp.stack([P[:, 2, 0], P[:, 2, 1], P[:, 2, 3] - W / 8.0], axis=-1)
        cy = jnp.stack([P[:, 0, 0], P[:, 0, 1], P[:, 0, 3] + H / 2.0], axis=-1)
        cd = jnp.zeros_like(cx)
    else:
        cx = jnp.stack([P[:, 0, 0], P[:, 0, 1], P[:, 0, 3]], axis=-1)
        cy = jnp.stack([P[:, 1, 0], P[:, 1, 1], P[:, 1, 3]], axis=-1)
        cd = jnp.stack([P[:, 2, 0], P[:, 2, 1], P[:, 2, 3]], axis=-1)
    return jnp.concatenate([cx, cy, cd], axis=-1).astype(jnp.float32)  # [B*N, 9]


def ipm_forward(images, Ks, RTs, xbound, ybound, extrinsic=True, tile_p=256):
    """IPM.forward.  images: [B, N, C, H, W] -> output: [B, C, h, w]."""
    B, N, C, H, W = images.shape
    pts, h_out, w_out = _make_planes(xbound, ybound)
    npts = h_out * w_out

    tile_p = min(tile_p, _round_up(npts, 128))
    npts_pad = _round_up(npts, tile_p)
    if npts_pad != npts:
        pts = jnp.pad(pts, ((0, 0), (0, npts_pad - npts)))
    n_ptiles = npts_pad // tile_p

    coefs = _projection_coeffs(Ks, RTs, H, W, extrinsic)       # [B*N, 9] f32
    # Native NCHW consumption: reshape only (contiguous), no transpose.
    img_r = images.reshape(B, N, C * H, W).astype(jnp.bfloat16)

    kernel = functools.partial(_ipm_kernel, H_img=H, W_img=W, C=C,
                               N_cams=N, extrinsic=extrinsic)

    out = pl.pallas_call(
        kernel,
        out_shape=jax.ShapeDtypeStruct((B, C, npts_pad), jnp.float32),
        grid_spec=pltpu.PrefetchScalarGridSpec(
            num_scalar_prefetch=0,
            grid=(B, n_ptiles, N),
            in_specs=[
                pl.BlockSpec((2, tile_p), lambda b, p, n: (0, p)),
                pl.BlockSpec(memory_space=pltpu.MemorySpace.SMEM),
                pl.BlockSpec((1, 1, C * H, W), lambda b, p, n: (b, n, 0, 0)),
            ],
            out_specs=pl.BlockSpec((1, C, tile_p), lambda b, p, n: (b, 0, p)),
        ),
        compiler_params=pltpu.CompilerParams(
            dimension_semantics=("parallel", "parallel", "arbitrary")),
    )(pts, coefs, img_r)

    out = out[:, :, :npts].reshape(B, C, h_out, w_out)         # free reshape
    return out


def ipm_reference(images, Ks, RTs, xbound, ybound, extrinsic=True):
    """Pure-JAX (f32) mirror of the PyTorch IPM forward, for verification."""
    B, N, C, H, W = images.shape
    pts, h_out, w_out = _make_planes(xbound, ybound)
    planes_t = jnp.stack([pts[0], pts[1],
                          jnp.zeros_like(pts[0]),
                          jnp.ones_like(pts[0])], axis=-1)     # [npts, 4]
    P = jnp.einsum("bnij,bnjk->bnik", Ks, RTs).reshape(B * N, 4, 4)
    pix = jnp.einsum("bij,pj->bip", P, planes_t)               # [BN, 4, npts]
    if extrinsic:
        px = pix[:, 2] - W / 8.0
        py = pix[:, 0] + H / 2.0
    else:
        eps = 1e-07
        px = pix[:, 0] / (pix[:, 2] + eps)
        py = pix[:, 1] / (pix[:, 2] + eps)
    imgs = jnp.transpose(images, (0, 1, 3, 4, 2)).reshape(B * N, H * W, C)
    x0 = jnp.floor(px); x1 = x0 + 1.0
    y0 = jnp.floor(py); y1 = y0 + 1.0
    x0c = jnp.clip(x0, 0.0, W - 1); x1c = jnp.clip(x1, 0.0, W - 1)
    y0c = jnp.clip(y0, 0.0, H - 1); y1c = jnp.clip(y1, 0.0, H - 1)
    wx0 = x1c - px; wx1 = px - x0c
    wy0 = y1c - py; wy1 = py - y0c

    def gather(xi, yi):
        idx = (xi + yi * W).astype(jnp.int32)
        return jnp.take_along_axis(imgs, idx[..., None], axis=1)

    out = ((wx0 * wy0)[..., None] * gather(x0c, y0c)
           + (wx0 * wy1)[..., None] * gather(x0c, y1c)
           + (wx1 * wy0)[..., None] * gather(x1c, y0c)
           + (wx1 * wy1)[..., None] * gather(x1c, y1c))
    out = out.reshape(B, N, h_out, w_out, C).max(axis=1)
    return jnp.transpose(out, (0, 3, 1, 2))


if __name__ == "__main__":
    key = jax.random.PRNGKey(0)
    B, N, C, H, W = 2, 3, 4, 16, 16
    xbound = [-8.0, 8.0, 1.0]    # -> w = 16
    ybound = [-4.0, 4.0, 0.5]    # -> h = 16

    k1, k2, k3 = jax.random.split(key, 3)
    images = jax.random.normal(k1, (B, N, C, H, W), dtype=jnp.float32)
    eye = jnp.eye(4, dtype=jnp.float32)
    Ks = eye + 0.1 * jax.random.normal(k2, (B, N, 4, 4), dtype=jnp.float32)
    RTs = eye + 0.1 * jax.random.normal(k3, (B, N, 4, 4), dtype=jnp.float32)

    out = ipm_forward(images, Ks, RTs, xbound, ybound, extrinsic=True)
    out = jax.block_until_ready(out)
    assert out.shape == (B, C, 16, 16), out.shape

    ref = ipm_reference(images, Ks, RTs, xbound, ybound, extrinsic=True)
    # Tolerance loosened vs. the f32-only version because the image / Wx
    # operands of the gather matmul are bf16 (f32 accumulation).
    np.testing.assert_allclose(np.asarray(out), np.asarray(ref),
                               atol=3e-2, rtol=3e-2)
    print("KERNEL_OK")
</pallas_src>

<mosaic_0001>
module attributes {stable_mosaic.version = 11 : i64} {
  func.func @_ipm_kernel(%arg0: i32, %arg1: i32, %arg2: i32, %arg3: memref<2x256xf32, #tpu.memory_space<vmem>>, %arg4: memref<6x9xf32, #tpu.memory_space<smem>>, %arg5: memref<1x1x64x16xbf16, #tpu.memory_space<vmem>>, %arg6: memref<1x4x256xf32, #tpu.memory_space<vmem>>) attributes {dimension_semantics = [#tpu.dimension_semantics<parallel>, #tpu.dimension_semantics<parallel>, #tpu.dimension_semantics<arbitrary>], iteration_bounds = array<i64: 2, 1, 3>, scalar_prefetch = 0 : i64, scratch_operands = 0 : i64, tpu.core_type = #tpu.core_type<tc>, window_params = [{transform_indices = @transform_0, window_bounds = array<i64: 2, 256>}, {transform_indices = @transform_1, window_bounds = array<i64: 6, 9>}, {transform_indices = @transform_2, window_bounds = array<i64: 1, 1, 64, 16>}, {transform_indices = @transform_3, window_bounds = array<i64: 1, 4, 256>}]} {
    %c3_i32 = arith.constant 3 : i32
    %0 = arith.muli %arg0, %c3_i32 : i32
    %1 = arith.addi %0, %arg2 : i32
    %c0 = arith.constant 0 : index
    %c0_0 = arith.constant 0 : index
    %2 = vector.load %arg3[%c0, %c0_0] : memref<2x256xf32, #tpu.memory_space<vmem>>, vector<2x256xf32>
    %3 = vector.extract_strided_slice %2 {offsets = [0, 0], sizes = [1, 256], strides = [1, 1]} : vector<2x256xf32> to vector<1x256xf32>
    %4 = vector.extract_strided_slice %2 {offsets = [1, 0], sizes = [1, 256], strides = [1, 1]} : vector<2x256xf32> to vector<1x256xf32>
    %5 = arith.index_cast %1 : i32 to index
    %c0_1 = arith.constant 0 : index
    %6 = memref.load %arg4[%5, %c0_1] : memref<6x9xf32, #tpu.memory_space<smem>>
    %7 = arith.index_cast %1 : i32 to index
    %c1 = arith.constant 1 : index
    %8 = memref.load %arg4[%7, %c1] : memref<6x9xf32, #tpu.memory_space<smem>>
    %9 = arith.index_cast %1 : i32 to index
    %c2 = arith.constant 2 : index
    %10 = memref.load %arg4[%9, %c2] : memref<6x9xf32, #tpu.memory_space<smem>>
    %11 = arith.index_cast %1 : i32 to index
    %c3 = arith.constant 3 : index
    %12 = memref.load %arg4[%11, %c3] : memref<6x9xf32, #tpu.memory_space<smem>>
    %13 = arith.index_cast %1 : i32 to index
    %c4 = arith.constant 4 : index
    %14 = memref.load %arg4[%13, %c4] : memref<6x9xf32, #tpu.memory_space<smem>>
    %15 = arith.index_cast %1 : i32 to index
    %c5 = arith.constant 5 : index
    %16 = memref.load %arg4[%15, %c5] : memref<6x9xf32, #tpu.memory_space<smem>>
    %17 = vector.broadcast %6 : f32 to vector<1x256xf32>
    %18 = arith.mulf %17, %3 : vector<1x256xf32>
    %19 = vector.broadcast %8 : f32 to vector<1x256xf32>
    %20 = arith.mulf %19, %4 : vector<1x256xf32>
    %21 = arith.addf %18, %20 : vector<1x256xf32>
    %22 = vector.broadcast %10 : f32 to vector<1x256xf32>
    %23 = arith.addf %21, %22 : vector<1x256xf32>
    %24 = vector.broadcast %12 : f32 to vector<1x256xf32>
    %25 = arith.mulf %24, %3 : vector<1x256xf32>
    %26 = vector.broadcast %14 : f32 to vector<1x256xf32>
    %27 = arith.mulf %26, %4 : vector<1x256xf32>
    %28 = arith.addf %25, %27 : vector<1x256xf32>
    %29 = vector.broadcast %16 : f32 to vector<1x256xf32>
    %30 = arith.addf %28, %29 : vector<1x256xf32>
    %31 = math.floor %23 : vector<1x256xf32>
    %cst = arith.constant 1.000000e+00 : f32
    %32 = vector.broadcast %cst : f32 to vector<1x256xf32>
    %33 = arith.addf %31, %32 : vector<1x256xf32>
    %34 = math.floor %30 : vector<1x256xf32>
    %cst_2 = arith.constant 1.000000e+00 : f32
    %35 = vector.broadcast %cst_2 : f32 to vector<1x256xf32>
    %36 = arith.addf %34, %35 : vector<1x256xf32>
    %cst_3 = arith.constant 0.000000e+00 : f32
    %cst_4 = arith.constant 1.500000e+01 : f32
    %37 = vector.broadcast %cst_3 : f32 to vector<1x256xf32>
    %38 = arith.maximumf %37, %31 : vector<1x256xf32>
    %39 = vector.broadcast %cst_4 : f32 to vector<1x256xf32>
    %40 = arith.minimumf %39, %38 : vector<1x256xf32>
    %cst_5 = arith.constant 0.000000e+00 : f32
    %cst_6 = arith.constant 1.500000e+01 : f32
    %41 = vector.broadcast %cst_5 : f32 to vector<1x256xf32>
    %42 = arith.maximumf %41, %33 : vector<1x256xf32>
    %43 = vector.broadcast %cst_6 : f32 to vector<1x256xf32>
    %44 = arith.minimumf %43, %42 : vector<1x256xf32>
    %cst_7 = arith.constant 0.000000e+00 : f32
    %cst_8 = arith.constant 1.500000e+01 : f32
    %45 = vector.broadcast %cst_7 : f32 to vector<1x256xf32>
    %46 = arith.maximumf %45, %34 : vector<1x256xf32>
    %47 = vector.broadcast %cst_8 : f32 to vector<1x256xf32>
    %48 = arith.minimumf %47, %46 : vector<1x256xf32>
    %cst_9 = arith.constant 0.000000e+00 : f32
    %cst_10 = arith.constant 1.500000e+01 : f32
    %49 = vector.broadcast %cst_9 : f32 to vector<1x256xf32>
    %50 = arith.maximumf %49, %36 : vector<1x256xf32>
    %51 = vector.broadcast %cst_10 : f32 to vector<1x256xf32>
    %52 = arith.minimumf %51, %50 : vector<1x256xf32>
    %53 = arith.subf %44, %23 : vector<1x256xf32>
    %54 = arith.subf %23, %40 : vector<1x256xf32>
    %55 = arith.subf %52, %30 : vector<1x256xf32>
    %56 = arith.subf %30, %48 : vector<1x256xf32>
    %57 = arith.fptosi %40 : vector<1x256xf32> to vector<1x256xi32>
    %58 = arith.fptosi %44 : vector<1x256xf32> to vector<1x256xi32>
    %59 = arith.fptosi %48 : vector<1x256xf32> to vector<1x256xi32>
    %60 = arith.fptosi %52 : vector<1x256xf32> to vector<1x256xi32>
    %61 = tpu.iota {dimensions = array<i32: 0>} : vector<16x256xi32>
    %62 = tpu.iota {dimensions = array<i32: 0>} : vector<16x256xi32>
    %63 = vector.broadcast %57 : vector<1x256xi32> to vector<16x256xi32>
    %64 = arith.cmpi eq, %61, %63 : vector<16x256xi32>
    %65 = arith.extui %64 : vector<16x256xi1> to vector<16x256xi32>
    %66 = arith.sitofp %65 : vector<16x256xi32> to vector<16x256xf32>
    %67 = vector.broadcast %53 : vector<1x256xf32> to vector<16x256xf32>
    %68 = arith.mulf %67, %66 : vector<16x256xf32>
    %69 = vector.broadcast %58 : vector<1x256xi32> to vector<16x256xi32>
    %70 = arith.cmpi eq, %61, %69 : vector<16x256xi32>
    %71 = arith.extui %70 : vector<16x256xi1> to vector<16x256xi32>
    %72 = arith.sitofp %71 : vector<16x256xi32> to vector<16x256xf32>
    %73 = vector.broadcast %54 : vector<1x256xf32> to vector<16x256xf32>
    %74 = arith.mulf %73, %72 : vector<16x256xf32>
    %75 = arith.addf %68, %74 : vector<16x256xf32>
    %76 = vector.broadcast %59 : vector<1x256xi32> to vector<16x256xi32>
    %77 = arith.cmpi eq, %62, %76 : vector<16x256xi32>
    %78 = arith.extui %77 : vector<16x256xi1> to vector<16x256xi32>
    %79 = arith.sitofp %78 : vector<16x256xi32> to vector<16x256xf32>
    %80 = vector.broadcast %55 : vector<1x256xf32> to vector<16x256xf32>
    %81 = arith.mulf %80, %79 : vector<16x256xf32>
    %82 = vector.broadcast %60 : vector<1x256xi32> to vector<16x256xi32>
    %83 = arith.cmpi eq, %62, %82 : vector<16x256xi32>
    %84 = arith.extui %83 : vector<16x256xi1> to vector<16x256xi32>
    %85 = arith.sitofp %84 : vector<16x256xi32> to vector<16x256xf32>
    %86 = vector.broadcast %56 : vector<1x256xf32> to vector<16x256xf32>
    %87 = arith.mulf %86, %85 : vector<16x256xf32>
    %88 = arith.addf %81, %87 : vector<16x256xf32>
    %c0_11 = arith.constant 0 : index
    %c0_12 = arith.constant 0 : index
    %c0_13 = arith.constant 0 : index
    %c0_14 = arith.constant 0 : index
    %89 = vector.load %arg5[%c0_11, %c0_12, %c0_13, %c0_14] : memref<1x1x64x16xbf16, #tpu.memory_space<vmem>>, vector<1x1x64x16xbf16>
    %90 = vector.shape_cast %89 : vector<1x1x64x16xbf16> to vector<64x16xbf16>
    %91 = arith.truncf %75 : vector<16x256xf32> to vector<16x256xbf16>
    %cst_15 = arith.constant dense<0.000000e+00> : vector<64x256xf32>
    %92 = tpu.matmul %90, %91, %cst_15 {dimension_numbers = #tpu.dot_dimension_numbers<[1], [0], [0], [1], [0, 0, 1, 1], [], []>} : vector<64x16xbf16>, vector<16x256xbf16>, vector<64x256xf32> -> vector<64x256xf32>
    %93 = vector.extract_strided_slice %92 {offsets = [0, 0], sizes = [16, 256], strides = [1, 1]} : vector<64x256xf32> to vector<16x256xf32>
    %94 = arith.mulf %93, %88 : vector<16x256xf32>
    %cst_16 = arith.constant dense<0.000000e+00> : vector<256xf32>
    %95 = vector.multi_reduction <add>, %94, %cst_16 [0] : vector<16x256xf32> to vector<256xf32>
    %96 = vector.shape_cast %95 : vector<256xf32> to vector<1x256xf32>
    %97 = vector.extract_strided_slice %92 {offsets = [16, 0], sizes = [16, 256], strides = [1, 1]} : vector<64x256xf32> to vector<16x256xf32>
    %98 = arith.mulf %97, %88 : vector<16x256xf32>
    %cst_17 = arith.constant dense<0.000000e+00> : vector<256xf32>
    %99 = vector.multi_reduction <add>, %98, %cst_17 [0] : vector<16x256xf32> to vector<256xf32>
    %100 = vector.shape_cast %99 : vector<256xf32> to vector<1x256xf32>
    %101 = vector.extract_strided_slice %92 {offsets = [32, 0], sizes = [16, 256], strides = [1, 1]} : vector<64x256xf32> to vector<16x256xf32>
    %102 = arith.mulf %101, %88 : vector<16x256xf32>
    %cst_18 = arith.constant dense<0.000000e+00> : vector<256xf32>
    %103 = vector.multi_reduction <add>, %102, %cst_18 [0] : vector<16x256xf32> to vector<256xf32>
    %104 = vector.shape_cast %103 : vector<256xf32> to vector<1x256xf32>
    %105 = vector.extract_strided_slice %92 {offsets = [48, 0], sizes = [16, 256], strides = [1, 1]} : vector<64x256xf32> to vector<16x256xf32>
    %106 = arith.mulf %105, %88 : vector<16x256xf32>
    %cst_19 = arith.constant dense<0.000000e+00> : vector<256xf32>
    %107 = vector.multi_reduction <add>, %106, %cst_19 [0] : vector<16x256xf32> to vector<256xf32>
    %108 = vector.shape_cast %107 : vector<256xf32> to vector<1x256xf32>
    %109 = tpu.concatenate %96, %100, %104, %108 in 0 : vector<1x256xf32>, vector<1x256xf32>, vector<1x256xf32>, vector<1x256xf32> -> vector<4x256xf32>
    %c0_i32 = arith.constant 0 : i32
    %110 = arith.cmpi eq, %arg2, %c0_i32 : i32
    %111 = arith.extui %110 : i1 to i32
    %c0_i32_20 = arith.constant 0 : i32
    %112 = arith.cmpi ne, %111, %c0_i32_20 : i32
    scf.if %112 {
      %c0_23 = arith.constant 0 : index
      %c0_24 = arith.constant 0 : index
      %c0_25 = arith.constant 0 : index
      %116 = vector.load %arg6[%c0_23, %c0_24, %c0_25] : memref<1x4x256xf32, #tpu.memory_space<vmem>>, vector<1x4x256xf32>
      %117 = vector.shape_cast %116 : vector<1x4x256xf32> to vector<4x256xf32>
      %118 = vector.shape_cast %109 : vector<4x256xf32> to vector<1x4x256xf32>
      tpu.vector_store %arg6[%c0_23, %c0_24, %c0_25], %118 {strides = array<i32>} : memref<1x4x256xf32, #tpu.memory_space<vmem>>, vector<1x4x256xf32>,
    } else {
    }
    %c0_i32_21 = arith.constant 0 : i32
    %113 = arith.cmpi sgt, %arg2, %c0_i32_21 : i32
    %114 = arith.extui %113 : i1 to i32
    %c0_i32_22 = arith.constant 0 : i32
    %115 = arith.cmpi ne, %114, %c0_i32_22 : i32
    scf.if %115 {
      %c0_23 = arith.constant 0 : index
      %c0_24 = arith.constant 0 : index
      %c0_25 = arith.constant 0 : index
      %116 = vector.load %arg6[%c0_23, %c0_24, %c0_25] : memref<1x4x256xf32, #tpu.memory_space<vmem>>, vector<1x4x256xf32>
      %117 = vector.shape_cast %116 : vector<1x4x256xf32> to vector<4x256xf32>
      %118 = arith.maximumf %117, %109 : vector<4x256xf32>
      %c0_26 = arith.constant 0 : index
      %c0_27 = arith.constant 0 : index
      %c0_28 = arith.constant 0 : index
      %119 = vector.load %arg6[%c0_26, %c0_27, %c0_28] : memref<1x4x256xf32, #tpu.memory_space<vmem>>, vector<1x4x256xf32>
      %120 = vector.shape_cast %119 : vector<1x4x256xf32> to vector<4x256xf32>
      %121 = vector.shape_cast %118 : vector<4x256xf32> to vector<1x4x256xf32>
      tpu.vector_store %arg6[%c0_26, %c0_27, %c0_28], %121 {strides = array<i32>} : memref<1x4x256xf32, #tpu.memory_space<vmem>>, vector<1x4x256xf32>,
    } else {
    }
    return
  }
  func.func @transform_0(%arg0: i32, %arg1: i32, %arg2: i32) -> (i32, i32) {
    %c0_i32 = arith.constant 0 : i32
    %c0_i32_0 = arith.constant 0 : i32
    return %c0_i32, %arg1 : i32, i32
  }
  func.func @transform_1(%arg0: i32, %arg1: i32, %arg2: i32) -> (i32, i32) {
    %c0_i32 = arith.constant 0 : i32
    %c0_i32_0 = arith.constant 0 : i32
    %c0_i32_1 = arith.constant 0 : i32
    return %c0_i32, %c0_i32_0 : i32, i32
  }
  func.func @transform_2(%arg0: i32, %arg1: i32, %arg2: i32) -> (i32, i32, i32, i32) {
    %c0_i32 = arith.constant 0 : i32
    %c0_i32_0 = arith.constant 0 : i32
    %c0_i32_1 = arith.constant 0 : i32
    return %arg0, %arg2, %c0_i32, %c0_i32_0 : i32, i32, i32, i32
  }
  func.func @transform_3(%arg0: i32, %arg1: i32, %arg2: i32) -> (i32, i32, i32) {
    %c0_i32 = arith.constant 0 : i32
    %c0_i32_0 = arith.constant 0 : i32
    return %arg0, %c0_i32, %arg1 : i32, i32, i32
  }
}

</mosaic_0001>

<llo_original>
// kernel: tpu_custom_call.1
$region0: #{tpu_custom_call.1}
  #allocation0 [shape = 'u32[]', space=smem, size = 0x4, offset = 0x4, fixed_abs, tag = 'smem constant byte address 0x4 - core index']
  #allocation1 [shape = 'u32[72,128]{1,0:T(1,128)}', space=vmem, size = 0x9000, scoped, tag = 'internal scratch']
  %s0 = inlined_call_operand.vmem [shape: f32[2,256], index: 0, kind: input, shape index: {}]
  %s1 = inlined_call_operand.vmem [shape: f32[6,9], index: 1, kind: input, shape index: {}]
  %s2 = inlined_call_operand.vmem [shape: bf16[2,3,64,16], index: 2, kind: input, shape index: {}]
  %s3 = inlined_call_operand.hbm [shape: f32[2,4,256], index: 3, kind: output, shape index: {}]
  %s4 = sld [smem:[#allocation0]]
  $region57: #{tpu_custom_call.1} parent=0
    _
  %s6 = ssub.s32 1, %s4
  %s7 = scalar_select 0, %s6, %s4
  $region1: #{tpu_custom_call.1} parent=0
    #allocation2 [shape = 'u8[4096]{0}', space=smem, size = 0x1000, scoped, tag = 'input window, operand 1, single buffered']
    #allocation3 [shape = 's32[2]{0}', space=sflag, size = 0x8, scoped, tag = 'scoped memory for tpu_custom_call.1']
    #allocation4 [shape = 's32[2]{0}', space=sflag, size = 0x8, scoped, tag = 'scoped memory for tpu_custom_call.1']
    #allocation5 [shape = 'u8[8192]{0}', space=vmem, size = 0x2000, scoped, tag = 'output window, operand 0']
    %8 = vsyncpa [#allocation4], 0
    %9 = vsyncpa [#allocation3], 0
    %s10 = scalar_lea.sflag [#allocation3], 1
    %11 = vsyncpa %s10, 0
    loop: start=0, step=1, limit=8
    $region2: #{tpu_custom_call.1} parent=1 // loop_pre_header
      _
    $region3: #{tpu_custom_call.1} parent=1 // loop_header
      %s13 = sphi 0, %s17
      %p14 = scmp.ge.s32.totalorder %s13, 8
      %s20 = sphi 0, %s39
      %s21 = sphi 0, %s35
      %s22 = sphi 0, %s31
      %s23 = sphi 0, %s20
      %s24 = sphi 0, %s21
      %s25 = sphi 0, %s22
      %s26 = sphi 0, %s23
      %s27 = sphi 0, %s24
      %s28 = sphi 0, %s25
      %s42 = sphi 0, %s44
      %s45 = sphi 0, %s42
      %s46 = sphi 0, %s45
      %s62 = sphi 0, %s46
      %s66 = sphi 0, %s66
      %s68 = sphi 0, %s66
      %s69 = sphi 0, %s68
      %s83 = sphi 0, %s69
      %s91 = sphi 0, %s93
      %s94 = sphi 0, %s91
      %s95 = sphi 0, %s94
      %s111 = sphi 0, %s95
      %s119 = sphi 0, %s121
      %s122 = sphi 0, %s119
      %s123 = sphi 0, %s122
      %s139 = sphi 0, %s123
    $region4: #{tpu_custom_call.1} parent=1 // loop_header_branch
      %16 = sbr.rel (%p14) target = $region8
    $region5: #{tpu_custom_call.1} parent=1 // loop_body
      %s18 = ssub.s32 %s13, 1
      %s19 = ssub.s32 %s13, 2
      %s29 = sadd.s32 1, %s22
      %p30 = scmp.ge.s32.totalorder %s29, 3
      %s31 = scalar_select %p30, 0, %s29
      %s32 = sadd.s32 1, %s21
      %s33 = scalar_select %p30, %s32, %s21
      %p34 = scmp.ge.s32.totalorder %s33, 1
      %s35 = scalar_select %p34, 0, %s33
      %s36 = sadd.s32 1, %s20
      %s37 = scalar_select %p34, %s36, %s20
      %p38 = scmp.ge.s32.totalorder %s37, 2
      %s39 = scalar_select %p38, 0, %s37
      %s40 = ssub.s32 %s21, %s35
      %p41 = scmp.eq.s32.totalorder %s40, 0
      %s43 = sadd.s32 %s42, 1
      %s44 = scalar_select %p41, %s42, %s43
      %p47 = pneg %p41
      %p48 = scmp.eq.s32.totalorder %s13, 5
      %p49 = por %p47, %p48
      %p50 = scmp.ne.s32.totalorder %s42, %s45
      %p51 = scmp.eq.s32.totalorder %s13, 0
      %p52 = por %p50, %p51
      %p53 = scmp.ne.s32.totalorder %s42, %s45
      %p54 = scmp.eq.s32.totalorder %s18, 5
      %p55 = por %p53, %p54
      %p56 = scmp.ne.s32.totalorder %s45, %s46
      %p57 = scmp.eq.s32.totalorder %s18, 0
      %p58 = por %p56, %p57
      %p59 = scmp.ne.s32.totalorder %s45, %s46
      %p60 = scmp.eq.s32.totalorder %s19, 5
      %p61 = por %p59, %p60
      %p63 = scmp.ne.s32.totalorder %s46, %s62
      %p64 = scmp.eq.s32.totalorder %s19, 0
      %p65 = por %p63, %p64
      %s67 = sadd.s32 %s66, 1
      %p70 = scmp.eq.s32.totalorder %s13, 5
      %p71 = scmp.ne.s32.totalorder %s66, %s68
      %p72 = scmp.eq.s32.totalorder %s13, 0
      %p73 = por %p71, %p72
      %p74 = scmp.ne.s32.totalorder %s66, %s68
      %p75 = scmp.eq.s32.totalorder %s18, 5
      %p76 = por %p74, %p75
      %p77 = scmp.ne.s32.totalorder %s68, %s69
      %p78 = scmp.eq.s32.totalorder %s18, 0
      %p79 = por %p77, %p78
      %p80 = scmp.ne.s32.totalorder %s68, %s69
      %p81 = scmp.eq.s32.totalorder %s19, 5
      %p82 = por %p80, %p81
      %p84 = scmp.ne.s32.totalorder %s69, %s83
      %p85 = scmp.eq.s32.totalorder %s19, 0
      %p86 = por %p84, %p85
      %s87 = ssub.s32 %s20, %s39
      %s88 = ssub.s32 %s22, %s31
      %s89 = sor.u32 %s87, %s88
      %p90 = scmp.eq.s32.totalorder %s89, 0
      %s92 = sadd.s32 %s91, 1
      %s93 = scalar_select %p90, %s91, %s92
      %p96 = pneg %p90
      %p97 = scmp.eq.s32.totalorder %s13, 5
      %p98 = por %p96, %p97
      %p99 = scmp.ne.s32.totalorder %s91, %s94
      %p100 = scmp.eq.s32.totalorder %s13, 0
      %p101 = por %p99, %p100
      %p102 = scmp.ne.s32.totalorder %s91, %s94
      %p103 = scmp.eq.s32.totalorder %s18, 5
      %p104 = por %p102, %p103
      %p105 = scmp.ne.s32.totalorder %s94, %s95
      %p106 = scmp.eq.s32.totalorder %s18, 0
      %p107 = por %p105, %p106
      %p108 = scmp.ne.s32.totalorder %s94, %s95
      %p109 = scmp.eq.s32.totalorder %s19, 5
      %p110 = por %p108, %p109
      %p112 = scmp.ne.s32.totalorder %s95, %s111
      %p113 = scmp.eq.s32.totalorder %s19, 0
      %p114 = por %p112, %p113
      %s115 = ssub.s32 %s20, %s39
      %s116 = ssub.s32 %s21, %s35
      %s117 = sor.u32 %s115, %s116
      %p118 = scmp.eq.s32.totalorder %s117, 0
      %s120 = sadd.s32 %s119, 1
      %s121 = scalar_select %p118, %s119, %s120
      %p124 = pneg %p118
      %p125 = scmp.eq.s32.totalorder %s13, 5
      %p126 = por %p124, %p125
      %p127 = scmp.ne.s32.totalorder %s119, %s122
      %p128 = scmp.eq.s32.totalorder %s13, 0
      %p129 = por %p127, %p128
      %p130 = scmp.ne.s32.totalorder %s119, %s122
      %p131 = scmp.eq.s32.totalorder %s18, 5
      %p132 = por %p130, %p131
      %p133 = scmp.ne.s32.totalorder %s122, %s123
      %p134 = scmp.eq.s32.totalorder %s18, 0
      %p135 = por %p133, %p134
      %p136 = scmp.ne.s32.totalorder %s122, %s123
      %p137 = scmp.eq.s32.totalorder %s19, 5
      %p138 = por %p136, %p137
      %p140 = scmp.ne.s32.totalorder %s123, %s139
      %p141 = scmp.eq.s32.totalorder %s19, 0
      %p142 = por %p140, %p141
      %p143 = scmp.le.s32.totalorder 1, %s13
      %p144 = scmp.lt.s32.totalorder %s13, 7
      %p145 = pnand %p143, %p144
      %p146 = pneg %p145
      // Predicated region
      $region9: #{tpu_custom_call.1} parent=5 // pred_check
        _
      $region10: #{tpu_custom_call.1} parent=5 // pred_check_branch
        %148 = sbr.rel (%p145) target = $region12
      $region11: #{tpu_custom_call.1} parent=5 // pred_region
        %s149 = ssub.s32 %s13, 1
        // Predicated region
        $region13: #{tpu_custom_call.1} parent=11 // pred_check
          %p150 = pneg %p58
        $region14: #{tpu_custom_call.1} parent=11 // pred_check_branch
          %152 = sbr.rel (%p150) target = $region16
        $region15: #{tpu_custom_call.1} parent=11 // pred_region
          %s153 = smul.u32 2, %s24
          %p154 = scmp.lt.s32.totalorder %s153, 1
          %s155 = scalar_select %p154, %s153, 1
          %s156 = smul.addr %s155, 2
          %s157 = scalar_lea.vmem %s0, %s156
          %s158 = smul.u32 2, %s24
        $region16: #{tpu_custom_call.1} parent=11 // pred_fallthru
          _
        // Predicated region
        $region17: #{tpu_custom_call.1} parent=11 // pred_check
          %p159 = pneg %p79
        $region18: #{tpu_custom_call.1} parent=11 // pred_check_branch
          %161 = sbr.rel (%p159) target = $region20
        $region19: #{tpu_custom_call.1} parent=11 // pred_region
          %163 = vsyncadd [#allocation4], 0
          %s165 = sshll.u32 %s1, 4
          %s166 = int_to_ptr.vmem [resolvable:$true] %s165
          %168 = dma.vmem_to_smem %s166, 128, [#allocation2], [#allocation4]
        $region20: #{tpu_custom_call.1} parent=11 // pred_fallthru
          _
      $region12: #{tpu_custom_call.1} parent=5 // pred_fallthru
        _
      %p169 = scmp.lt.s32.totalorder %s13, 6
      // Predicated region
      $region21: #{tpu_custom_call.1} parent=5 // pred_check
        %p170 = pneg %p169
      $region22: #{tpu_custom_call.1} parent=5 // pred_check_branch
        %172 = sbr.rel (%p170) target = $region24
      $region23: #{tpu_custom_call.1} parent=5 // pred_region
        // Predicated region
        $region25: #{tpu_custom_call.1} parent=23 // pred_check
          %p173 = pneg %p101
        $region26: #{tpu_custom_call.1} parent=23 // pred_check_branch
          %175 = sbr.rel (%p173) target = $region28
        $region27: #{tpu_custom_call.1} parent=23 // pred_region
          %p176 = scmp.lt.s32.totalorder %s20, 1
          %s177 = scalar_select %p176, %s20, 1
          %p178 = scmp.lt.s32.totalorder %s22, 2
          %s179 = scalar_select %p178, %s22, 2
          %s180 = smul.addr %s179, 8
          %s181 = smul.addr %s177, 24
          %s182 = sadd.s32 %s180, %s181
          %s183 = smul.addr %s182, 4
          %s184 = scalar_lea.vmem %s2, %s183
        $region28: #{tpu_custom_call.1} parent=23 // pred_fallthru
          _
      $region24: #{tpu_custom_call.1} parent=5 // pred_fallthru
        _
      %p185 = scmp.le.s32.totalorder 1, %s13
      %p186 = scmp.lt.s32.totalorder %s13, 7
      %p187 = pnand %p185, %p186
      %p188 = pneg %p187
      // Predicated region
      $region29: #{tpu_custom_call.1} parent=5 // pred_check
        _
      $region30: #{tpu_custom_call.1} parent=5 // pred_check_branch
        %190 = sbr.rel (%p187) target = $region32
      $region31: #{tpu_custom_call.1} parent=5 // pred_region
        %s191 = ssub.s32 %s13, 1
        // Predicated region
        $region33: #{tpu_custom_call.1} parent=31 // pred_check
          %p192 = pneg %p79
        $region34: #{tpu_custom_call.1} parent=31 // pred_check_branch
          %194 = sbr.rel (%p192) target = $region36
        $region35: #{tpu_custom_call.1} parent=31 // pred_region
          %196 = dma.done [#allocation4], 128
        $region36: #{tpu_custom_call.1} parent=31 // pred_fallthru
          _
        %197 = sfence
        %s198 = smul.u32 2, %s24
        %p199 = scmp.lt.s32.totalorder %s198, 1
        %s200 = scalar_select %p199, %s198, 1
        %s201 = smul.addr %s200, 2
        %s202 = scalar_lea.vmem %s0, %s201
        %p203 = pneg %p58
        %p204 = pneg %p55
        %p205 = pneg %p79
        %p206 = pneg %p76
        %p207 = scmp.lt.s32.totalorder %s23, 1
        %s208 = scalar_select %p207, %s23, 1
        %p209 = scmp.lt.s32.totalorder %s25, 2
        %s210 = scalar_select %p209, %s25, 2
        %s211 = smul.addr %s210, 8
        %s212 = smul.addr %s208, 24
        %s213 = sadd.s32 %s211, %s212
        %s214 = smul.addr %s213, 4
        %s215 = scalar_lea.vmem %s2, %s214
        %p216 = pneg %p107
        %p217 = pneg %p104
        %p218 = pneg %p135
        %p219 = pneg %p132
        %s220 = sand.u32 %s122, 1
        %s221 = scalar_lea.sflag [#allocation3], %s220
        %s222 = sand.u32 %s122, 1
        %s223 = smul.addr %s222, 8
        %s224 = scalar_lea.vmem [#allocation5], %s223
        %s225 = smul.u32 2, %s24
        %p226 = scmp.lt.s32.totalorder %s225, 1
        %s227 = scalar_select %p226, %s225, 1
        %s228 = smul.addr %s227, 2
        %s229 = scalar_lea.vmem %s0, %s228
        %s230 = smul.u32 2, %s24
        %p231 = scmp.lt.s32.totalorder %s23, 1
        %s232 = scalar_select %p231, %s23, 1
        %p233 = scmp.lt.s32.totalorder %s25, 2
        %s234 = scalar_select %p233, %s25, 2
        %s235 = smul.addr %s234, 8
        %s236 = smul.addr %s232, 24
        %s237 = sadd.s32 %s235, %s236
        %s238 = smul.addr %s237, 4
        %s239 = scalar_lea.vmem %s2, %s238
        %s240 = smul.u32 2, %s24
        %s242 = smul.u32 %s23, 3
        %s243 = sadd.s32 %s242, %s25
        %v244 = vld [vmem:[%s229] sm:$0xf]
        %s245 = smul.u32 %s243, 128
        %s246 = sld [smem:[#allocation2 + %s245]]
        %s247 = sadd.s32 %s245, 1
        %s248 = sld [smem:[#allocation2 + %s247]]
        %s249 = sadd.s32 %s245, 2
        %s250 = sld [smem:[#allocation2 + %s249]]
        %s251 = sadd.s32 %s245, 3
        %s252 = sld [smem:[#allocation2 + %s251]]
        %s253 = sadd.s32 %s245, 4
        %s254 = sld [smem:[#allocation2 + %s253]]
        %s255 = sadd.s32 %s245, 5
        %s256 = sld [smem:[#allocation2 + %s255]]
        %v257 = vstv %s246
        %v258 = vmul.f32 %v257, %v244
        %v259 = vstv %s248
        %v260 = vmul.f32 %v259, %v244
        %v262 = vrot.slane %v260, 7
        %v263 = vrot.slane %v262, 2
        %v265 = vadd.f32 %v258, %v263
        %v266 = vstv %s250
        %v267 = vadd.f32 %v265, %v266
        %v268 = vstv %s252
        %v269 = vmul.f32 %v268, %v244
        %v270 = vstv %s254
        %v271 = vmul.f32 %v270, %v244
        %v273 = vrot.slane %v271, 7
        %v274 = vrot.slane %v273, 2
        %v276 = vadd.f32 %v269, %v274
        %v277 = vstv %s256
        %v278 = vadd.f32 %v276, %v277
        %v279 = vfloor.f32 %v267
        %v280 = vadd.f32 %v279, 1.0
        %v281 = vfloor.f32 %v278
        %v282 = vadd.f32 %v281, 1.0
        %v283 = vmax.f32 %v279, 0.0
        %v284 = vmin.f32 %v283, 15.0
        %v285 = vmax.f32 %v280, 0.0
        %v286 = vmin.f32 %v285, 15.0
        %v287 = vmax.f32 %v281, 0.0
        %v288 = vmin.f32 %v287, 15.0
        %v289 = vmax.f32 %v282, 0.0
        %v290 = vmin.f32 %v289, 15.0
        %v291 = vsub.f32 %v286, %v267
        %v292 = vsub.f32 %v267, %v284
        %v293 = vsub.f32 %v290, %v278
        %v294 = vsub.f32 %v278, %v288
        %v295 = vcvt.f32.s32.to.zero.pseudo %v284
        %v296 = vcvt.f32.s32.to.zero.pseudo %v286
        %v297 = vcvt.f32.s32.to.zero.pseudo %v288
        %v298 = vcvt.f32.s32.to.zero.pseudo %v290
        %v299 = vlaneseq
        %v300 = vshrl.u32 %v299, 7
        %v301 = vadd.s32 %v300, 8
        %v302 = vperm.slane %v295, 0
        %v303 = vperm.slane %v295, 2
        %v304 = vperm.slane %v302, 0
        %v305 = vperm.slane %v303, 0
        %vm306 = vcmp.eq.s32.totalorder %v300, %v304
        %vm307 = vcmp.eq.s32.totalorder %v300, %v305
        %vm308 = vcmp.eq.s32.totalorder %v301, %v304
        %vm309 = vcmp.eq.s32.totalorder %v301, %v305
        %v310 = vsel %vm306, 1, 0
        %v311 = vsel %vm307, 1, 0
        %v312 = vsel %vm308, 1, 0
        %v313 = vsel %vm309, 1, 0
        %v314 = vcvt.s32.f32 %v310
        %v315 = vcvt.s32.f32 %v311
        %v316 = vcvt.s32.f32 %v312
        %v317 = vcvt.s32.f32 %v313
        %v319 = vperm.slane %v291, 0
        %v320 = vperm.slane %v291, 2
        %v323 = vperm.slane %v319, 0
        %v324 = vperm.slane %v320, 0
        %v325 = vmul.f32 %v323, %v314
        %v326 = vmul.f32 %v324, %v315
        %v327 = vmul.f32 %v323, %v316
        %v328 = vmul.f32 %v324, %v317
        %v329 = vperm.slane %v296, 0
        %v330 = vperm.slane %v296, 2
        %v331 = vperm.slane %v329, 0
        %v332 = vperm.slane %v330, 0
        %vm333 = vcmp.eq.s32.totalorder %v300, %v331
        %vm334 = vcmp.eq.s32.totalorder %v300, %v332
        %vm335 = vcmp.eq.s32.totalorder %v301, %v331
        %vm336 = vcmp.eq.s32.totalorder %v301, %v332
        %v337 = vsel %vm333, 1, 0
        %v338 = vsel %vm334, 1, 0
        %v339 = vsel %vm335, 1, 0
        %v340 = vsel %vm336, 1, 0
        %v341 = vcvt.s32.f32 %v337
        %v342 = vcvt.s32.f32 %v338
        %v343 = vcvt.s32.f32 %v339
        %v344 = vcvt.s32.f32 %v340
        %v346 = vperm.slane %v292, 0
        %v347 = vperm.slane %v292, 2
        %v350 = vperm.slane %v346, 0
        %v351 = vperm.slane %v347, 0
        %v352 = vmul.f32 %v350, %v341
        %v353 = vmul.f32 %v351, %v342
        %v354 = vmul.f32 %v350, %v343
        %v355 = vmul.f32 %v351, %v344
        %v356 = vadd.f32 %v325, %v352
        %v357 = vadd.f32 %v326, %v353
        %v358 = vadd.f32 %v327, %v354
        %v359 = vadd.f32 %v328, %v355
        %v360 = vperm.slane %v297, 0
        %v361 = vperm.slane %v297, 2
        %v362 = vperm.slane %v360, 0
        %v363 = vperm.slane %v361, 0
        %vm364 = vcmp.eq.s32.totalorder %v300, %v362
        %vm365 = vcmp.eq.s32.totalorder %v300, %v363
        %vm366 = vcmp.eq.s32.totalorder %v301, %v362
        %vm367 = vcmp.eq.s32.totalorder %v301, %v363
        %v368 = vsel %vm364, 1, 0
        %v369 = vsel %vm365, 1, 0
        %v370 = vsel %vm366, 1, 0
        %v371 = vsel %vm367, 1, 0
        %v372 = vcvt.s32.f32 %v368
        %v373 = vcvt.s32.f32 %v369
        %v374 = vcvt.s32.f32 %v370
        %v375 = vcvt.s32.f32 %v371
        %v377 = vperm.slane %v293, 0
        %v378 = vperm.slane %v293, 2
        %v381 = vperm.slane %v377, 0
        %v382 = vperm.slane %v378, 0
        %v383 = vmul.f32 %v381, %v372
        %v384 = vmul.f32 %v382, %v373
        %v385 = vmul.f32 %v381, %v374
        %v386 = vmul.f32 %v382, %v375
        %v387 = vperm.slane %v298, 0
        %v388 = vperm.slane %v298, 2
        %v389 = vperm.slane %v387, 0
        %v390 = vperm.slane %v388, 0
        %vm391 = vcmp.eq.s32.totalorder %v300, %v389
        %vm392 = vcmp.eq.s32.totalorder %v300, %v390
        %vm393 = vcmp.eq.s32.totalorder %v301, %v389
        %vm394 = vcmp.eq.s32.totalorder %v301, %v390
        %v395 = vsel %vm391, 1, 0
        %v396 = vsel %vm392, 1, 0
        %v397 = vsel %vm393, 1, 0
        %v398 = vsel %vm394, 1, 0
        %v399 = vcvt.s32.f32 %v395
        %v400 = vcvt.s32.f32 %v396
        %v401 = vcvt.s32.f32 %v397
        %v402 = vcvt.s32.f32 %v398
        %v404 = vperm.slane %v294, 0
        %v405 = vperm.slane %v294, 2
        %v408 = vperm.slane %v404, 0
        %v409 = vperm.slane %v405, 0
        %v410 = vmul.f32 %v408, %v399
        %v411 = vmul.f32 %v409, %v400
        %v412 = vmul.f32 %v408, %v401
        %v413 = vmul.f32 %v409, %v402
        %v414 = vadd.f32 %v383, %v410
        %v415 = vadd.f32 %v384, %v411
        %v416 = vadd.f32 %v385, %v412
        %v417 = vadd.f32 %v386, %v413
        %v418 = vld [vmem:[%s239] sm:$0xf]
        %v419 = vld [vmem:[%s239 + $0x4] sm:$0xf]
        %v420 = vld [vmem:[%s239 + $0x8] sm:$0xf]
        %v421 = vld [vmem:[%s239 + $0xc] sm:$0xf]
        %v422 = vld [vmem:[%s239 + $0x10] sm:$0xf]
        %v423 = vld [vmem:[%s239 + $0x14] sm:$0xf]
        %v424 = vld [vmem:[%s239 + $0x18] sm:$0xf]
        %v425 = vld [vmem:[%s239 + $0x1c] sm:$0xf]
        %v426 = vpack.c.bf16 %v358, %v356
        %v427 = vpack.c.bf16 %v359, %v357
        %v436 = vunpack.c.l.b16 %v418
        %v437 = vunpack.c.l.b16 %v419
        %v438 = vunpack.c.l.b16 %v420
        %v439 = vunpack.c.l.b16 %v421
        %v440 = vunpack.c.l.b16 %v422
        %v441 = vunpack.c.l.b16 %v423
        %v442 = vunpack.c.l.b16 %v424
        %v443 = vunpack.c.l.b16 %v425
        %v444 = vpack.c.b16 %v437, %v436
        %v445 = vpack.c.b16 %v439, %v438
        %v446 = vpack.c.b16 %v441, %v440
        %v447 = vpack.c.b16 %v443, %v442
        %vm448 = vcmask 130048
        %v450 = vsel %vm448, %v444, 0
        %v453 = vsel %vm448, %v445, 0
        %v456 = vsel %vm448, %v446, 0
        %v459 = vsel %vm448, %v447, 0
        %461 = vmatpush.bf16.msra.mxu0 0
        %462 = vmatpush.bf16.msra.mxu0 0
        %463 = vmatpush.bf16.msra.mxu0 0
        %464 = vmatpush.bf16.msra.mxu0 0
        %465 = vmatpush.bf16.msra.mxu0 0
        %466 = vmatpush.bf16.msra.mxu0 0
        %467 = vmatpush.bf16.msra.mxu0 0
        %468 = vmatpush.bf16.msra.mxu0 %v426
        %469 = vmatmul.bf16.gmra.mxu0 %v450
        %v470 = vpop.f32.mrf.mxu0
        %v471 = vadd.f32 0.0, %v470
        %v472 = vpop.f32.mrf.mxu0
        %v473 = vadd.f32 0.0, %v472
        %474 = vmatmul.bf16.gmra.mxu0 %v453
        %v475 = vpop.f32.mrf.mxu0
        %v476 = vadd.f32 0.0, %v475
        %v477 = vpop.f32.mrf.mxu0
        %v478 = vadd.f32 0.0, %v477
        %479 = vmatmul.bf16.gmra.mxu0 %v456
        %v480 = vpop.f32.mrf.mxu0
        %v481 = vadd.f32 0.0, %v480
        %v482 = vpop.f32.mrf.mxu0
        %v483 = vadd.f32 0.0, %v482
        %484 = vmatmul.bf16.gmra.mxu0 %v459
        %v485 = vpop.f32.mrf.mxu0
        %v486 = vadd.f32 0.0, %v485
        %v487 = vpop.f32.mrf.mxu0
        %v488 = vadd.f32 0.0, %v487
        %489 = vdwg.mxu0
        %490 = vmatpush.bf16.msra.mxu0 0
        %491 = vmatpush.bf16.msra.mxu0 0
        %492 = vmatpush.bf16.msra.mxu0 0
        %493 = vmatpush.bf16.msra.mxu0 0
        %494 = vmatpush.bf16.msra.mxu0 0
        %495 = vmatpush.bf16.msra.mxu0 0
        %496 = vmatpush.bf16.msra.mxu0 0
        %497 = vmatpush.bf16.msra.mxu0 %v427
        %498 = vmatmul.bf16.gmra.mxu0 %v450
        %v499 = vpop.f32.mrf.mxu0
        %v500 = vadd.f32 0.0, %v499
        %v501 = vpop.f32.mrf.mxu0
        %v502 = vadd.f32 0.0, %v501
        %503 = vmatmul.bf16.gmra.mxu0 %v453
        %v504 = vpop.f32.mrf.mxu0
        %v505 = vadd.f32 0.0, %v504
        %v506 = vpop.f32.mrf.mxu0
        %v507 = vadd.f32 0.0, %v506
        %508 = vmatmul.bf16.gmra.mxu0 %v456
        %v509 = vpop.f32.mrf.mxu0
        %v510 = vadd.f32 0.0, %v509
        %v511 = vpop.f32.mrf.mxu0
        %v512 = vadd.f32 0.0, %v511
        %513 = vmatmul.bf16.gmra.mxu0 %v459
        %v514 = vpop.f32.mrf.mxu0
        %v515 = vadd.f32 0.0, %v514
        %v516 = vpop.f32.mrf.mxu0
        %v517 = vadd.f32 0.0, %v516
        %518 = vdwg.mxu0
        %v519 = vmul.f32 %v471, %v414
        %v520 = vmul.f32 %v500, %v415
        %v521 = vmul.f32 %v473, %v416
        %v522 = vmul.f32 %v502, %v417
        %v523 = vadd.f32 %v519, %v521
        %v524 = vrot.slane %v523, 4
        %v525 = vadd.f32 %v523, %v524
        %v526 = vrot.slane %v525, 2
        %v527 = vadd.f32 %v525, %v526
        %v528 = vrot.slane %v527, 1
        %v529 = vadd.f32 %v527, %v528
        %v530 = vadd.f32 %v520, %v522
        %v531 = vrot.slane %v530, 4
        %v532 = vadd.f32 %v530, %v531
        %v533 = vrot.slane %v532, 2
        %v534 = vadd.f32 %v532, %v533
        %v535 = vrot.slane %v534, 1
        %v536 = vadd.f32 %v534, %v535
        %v537 = vmul.f32 %v476, %v414
        %v538 = vmul.f32 %v505, %v415
        %v539 = vmul.f32 %v478, %v416
        %v540 = vmul.f32 %v507, %v417
        %v541 = vadd.f32 %v537, %v539
        %v542 = vrot.slane %v541, 4
        %v543 = vadd.f32 %v541, %v542
        %v544 = vrot.slane %v543, 2
        %v545 = vadd.f32 %v543, %v544
        %v546 = vrot.slane %v545, 1
        %v547 = vadd.f32 %v545, %v546
        %v548 = vadd.f32 %v538, %v540
        %v549 = vrot.slane %v548, 4
        %v550 = vadd.f32 %v548, %v549
        %v551 = vrot.slane %v550, 2
        %v552 = vadd.f32 %v550, %v551
        %v553 = vrot.slane %v552, 1
        %v554 = vadd.f32 %v552, %v553
        %v555 = vmul.f32 %v481, %v414
        %v556 = vmul.f32 %v510, %v415
        %v557 = vmul.f32 %v483, %v416
        %v558 = vmul.f32 %v512, %v417
        %v559 = vadd.f32 %v555, %v557
        %v560 = vrot.slane %v559, 4
        %v561 = vadd.f32 %v559, %v560
        %v562 = vrot.slane %v561, 2
        %v563 = vadd.f32 %v561, %v562
        %v564 = vrot.slane %v563, 1
        %v565 = vadd.f32 %v563, %v564
        %v566 = vadd.f32 %v556, %v558
        %v567 = vrot.slane %v566, 4
        %v568 = vadd.f32 %v566, %v567
        %v569 = vrot.slane %v568, 2
        %v570 = vadd.f32 %v568, %v569
        %v571 = vrot.slane %v570, 1
        %v572 = vadd.f32 %v570, %v571
        %v573 = vmul.f32 %v486, %v414
        %v574 = vmul.f32 %v515, %v415
        %v575 = vmul.f32 %v488, %v416
        %v576 = vmul.f32 %v517, %v417
        %v577 = vadd.f32 %v573, %v575
        %v578 = vrot.slane %v577, 4
        %v579 = vadd.f32 %v577, %v578
        %v580 = vrot.slane %v579, 2
        %v581 = vadd.f32 %v579, %v580
        %v582 = vrot.slane %v581, 1
        %v583 = vadd.f32 %v581, %v582
        %v584 = vadd.f32 %v574, %v576
        %v585 = vrot.slane %v584, 4
        %v586 = vadd.f32 %v584, %v585
        %v587 = vrot.slane %v586, 2
        %v588 = vadd.f32 %v586, %v587
        %v589 = vrot.slane %v588, 1
        %v590 = vadd.f32 %v588, %v589
        %vm591 = vcmask 1040384
        %v592 = vsel %vm591, %v529, %v547
        %v593 = vsel %vm591, %v536, %v554
        %vm594 = vcmask 1041408
        %v595 = vsel %vm594, %v592, %v565
        %v596 = vsel %vm594, %v593, %v572
        %vm597 = vcmask 1042432
        %v598 = vsel %vm597, %v595, %v583
        %v599 = vsel %vm597, %v596, %v590
        %p600 = scmp.eq.s32.totalorder %s25, 0
        // Predicated region
        $region37: #{tpu_custom_call.1} parent=31 // pred_check
          %p601 = pneg %p600
        $region38: #{tpu_custom_call.1} parent=31 // pred_check_branch
          %603 = sbr.rel (%p601) target = $region40
        $region39: #{tpu_custom_call.1} parent=31 // pred_region
          %v606 = vrot.slane %v599, 4
          %vm607 = vcmask 1043456
          %v608 = vsel %vm607, %v598, %v606
          %610 = vst [vmem:[%s224] sm:$0xff] %v608
        $region40: #{tpu_custom_call.1} parent=31 // pred_fallthru
          _
        %p611 = scmp.gt.s32.totalorder %s25, 0
        // Predicated region
        $region41: #{tpu_custom_call.1} parent=31 // pred_check
          %p612 = pneg %p611
        $region42: #{tpu_custom_call.1} parent=31 // pred_check_branch
          %614 = sbr.rel (%p612) target = $region44
        $region43: #{tpu_custom_call.1} parent=31 // pred_region
          %v615 = vld [vmem:[%s224] sm:$0xff]
          %v618 = vrot.slane %v599, 4
          %vm619 = vcmask 1043456
          %v620 = vsel %vm619, %v598, %v618
          %v622 = vmax.f32 %v615, %v620
          %623 = vst [vmem:[%s224] sm:$0xff] %v622
        $region44: #{tpu_custom_call.1} parent=31 // pred_fallthru
          _
        %s624 = sand.u32 %s122, 1
        %s625 = scalar_lea.sflag [#allocation3], %s624
        %s626 = sand.u32 %s122, 1
        %s627 = smul.addr %s626, 8
        %s628 = scalar_lea.vmem [#allocation5], %s627
        // Predicated region
        $region45: #{tpu_custom_call.1} parent=31 // pred_check
          %p629 = pneg %p132
        $region46: #{tpu_custom_call.1} parent=31 // pred_check_branch
          %631 = sbr.rel (%p629) target = $region48
        $region47: #{tpu_custom_call.1} parent=31 // pred_region
          %s632 = smul.u32 2, %s24
          %634 = vsyncadd %s625, 0
          %s635 = smul.addr %s23, 2
          %s636 = sadd.s32 %s632, %s635
          %s637 = smul.addr %s636, 4
          %s638 = scalar_lea.hbm %s3, %s637
          %s640 = sshll.u32 %s628, 4
          %s641 = int_to_ptr.vmem [resolvable:$true] %s640
          %s642 = sshll.u32 %s638, 4
          %s643 = int_to_ptr.hbm [resolvable:$true] %s642
          %645 = dma.vmem_to_hbm [thread:$0]  %s641, 128, %s643, %s625
        $region48: #{tpu_custom_call.1} parent=31 // pred_fallthru
          _
      $region32: #{tpu_custom_call.1} parent=5 // pred_fallthru
        _
      %p646 = scmp.le.s32.totalorder 2, %s13
      // Predicated region
      $region49: #{tpu_custom_call.1} parent=5 // pred_check
        %p647 = pneg %p646
      $region50: #{tpu_custom_call.1} parent=5 // pred_check_branch
        %649 = sbr.rel (%p647) target = $region52
      $region51: #{tpu_custom_call.1} parent=5 // pred_region
        %s650 = ssub.s32 %s13, 2
        // Predicated region
        $region53: #{tpu_custom_call.1} parent=51 // pred_check
          %p651 = pneg %p138
        $region54: #{tpu_custom_call.1} parent=51 // pred_check_branch
          %653 = sbr.rel (%p651) target = $region56
        $region55: #{tpu_custom_call.1} parent=51 // pred_region
          %s654 = sand.u32 %s123, 1
          %s655 = scalar_lea.sflag [#allocation3], %s654
          %s656 = sand.u32 %s123, 1
          %s657 = smul.addr %s656, 8
          %s658 = scalar_lea.vmem [#allocation5], %s657
          %660 = dma.done %s655, 128
        $region56: #{tpu_custom_call.1} parent=51 // pred_fallthru
          _
      $region52: #{tpu_custom_call.1} parent=5 // pred_fallthru
        _
    $region6: #{tpu_custom_call.1} parent=1 // loop_footer
      %s17 = sadd.s32 1, %s13
    $region7: #{tpu_custom_call.1} parent=1 // loop_footer_branch
      %12 = sbr.rel target = $region3
    $region8: #{tpu_custom_call.1} parent=1 // loop_exit
      _
    %661 = vsyncpa [#allocation3], 1
    %s662 = scalar_lea.sflag [#allocation3], 1
    %663 = vsyncpa %s662, 1
    %664 = vsyncpa [#allocation4], 1
    %s665 = scalar_lea.sflag [#allocation4], 1
    %666 = vsyncpa %s665, 1

</llo_original>
